<compile_context>
chip_gen: v7x
topology: tpu7x:2x2x1
jax: 0.10.0
libtpu: 0.0.40
codegen_flags: <defaults>
</compile_context>

<pallas_src>
import jax
import jax.numpy as jnp
from jax.experimental import pallas as pl
from jax.experimental.pallas import tpu as pltpu

_LANES = 128


def _round_up(a: int, b: int) -> int:
    return ((a + b - 1) // b) * b


def _clip_bounds(dtype):
    """Clamp bounds in the input dtype (never wraps for narrow int dtypes)."""
    dt = jnp.dtype(dtype)
    if jnp.issubdtype(dt, jnp.integer):
        info = jnp.iinfo(dt)
        lo = dt.type(max(0, int(info.min)))
        hi = dt.type(min(255, int(info.max)))
    else:
        lo = dt.type(0.0)
        hi = dt.type(255.0)  # exact in f32/bf16/f16; fp8 would round (out of scope)
    return lo, hi


def _chip_tuning():
    """Per-generation (block_bytes, num_tensorcores, vmem_limit_bytes|None)."""
    kind = ""
    try:
        kind = jax.devices()[0].device_kind.lower()
    except Exception:
        pass
    if "7" in kind:
        # v7x: ~3.2 TB/s HBM, 64 MiB VMEM/TC, 2 TCs/chip behind one device.
        return 8 << 20, 2, 48 << 20
    if "v6" in kind:
        # v6e: ~1.4 TB/s HBM, 128 MiB VMEM, 1 TC.
        return 4 << 20, 1, 40 << 20
    if "v4" in kind or "v5p" in kind:
        # Megacore parts (2 TCs behind one device): split, keep blocks modest.
        return 2 << 20, 2, None
    # v5e and unknown/older: conservative, fits the 16 MiB default scoped VMEM.
    return 2 << 20, 1, None


def _clipped_relu_kernel(x_ref, o_ref):
    # Elementwise clamp on the whole VMEM tile (VPU filler work; DMA-bound).
    x = x_ref[...]
    lo, hi = _clip_bounds(x.dtype)
    o_ref[...] = jnp.minimum(jnp.maximum(x, lo), hi)


def _clipped_relu_2d(x2d: jax.Array) -> jax.Array:
    rows, cols = x2d.shape
    itemsize = jnp.dtype(x2d.dtype).itemsize
    block_bytes, num_tc, vmem_limit = _chip_tuning()

    # Packed-sublane group: 8 rows for 32-bit, 16 for bf16, 32 for int8/fp8.
    sub_align = max(8, 32 // itemsize)
    padded_cols = _round_up(cols, _LANES)  # VMEM footprint pads lanes to 128
    row_bytes = padded_cols * itemsize

    # Safety valve: if even the smallest legal block (sub_align rows, full
    # lane-padded width) cannot fit the per-generation budget, let XLA do it.
    if min(rows, sub_align) * row_bytes > block_bytes:
        lo, hi = _clip_bounds(x2d.dtype)
        return jnp.minimum(jnp.maximum(x2d, lo), hi)

    # Biggest block that fits the budget, aligned to the packed sublane group.
    tile_rows = max(sub_align, (block_bytes // row_bytes) // sub_align * sub_align)

    if num_tc > 1 and rows > 2 * sub_align:
        # Multi-TC only: give each TensorCore >= 2 pipelined grid steps, but
        # never shrink a block below ~1 MiB (keeps ~85% of HBM roofline).
        min_tile = max(sub_align, ((1 << 20) // row_bytes) // sub_align * sub_align)
        split_tile = _round_up(pl.cdiv(rows, 2 * num_tc), sub_align)
        tile_rows = min(tile_rows, max(min_tile, split_tile))

    if tile_rows >= rows:
        tile_rows = rows  # single full-extent block (legal for any row count)

    grid = (pl.cdiv(rows, tile_rows),)
    nbytes = rows * cols * itemsize

    compiler_kwargs = dict(dimension_semantics=("parallel",))
    if vmem_limit is not None:
        compiler_kwargs["vmem_limit_bytes"] = vmem_limit

    return pl.pallas_call(
        _clipped_relu_kernel,
        out_shape=jax.ShapeDtypeStruct((rows, cols), x2d.dtype),
        grid_spec=pltpu.PrefetchScalarGridSpec(
            num_scalar_prefetch=0,
            grid=grid,
            in_specs=[pl.BlockSpec((tile_rows, cols), lambda i: (i, 0))],
            out_specs=pl.BlockSpec((tile_rows, cols), lambda i: (i, 0)),
        ),
        compiler_params=pltpu.CompilerParams(**compiler_kwargs),
        cost_estimate=pl.CostEstimate(
            flops=2 * rows * cols,
            transcendentals=0,
            bytes_accessed=2 * nbytes,
        ),
    )(x2d)


def clipped_relu(x: jax.Array) -> jax.Array:
    """Elementwise clamp(x, 0, 255) matching torch.Tensor.clamp(min=0., max=255.)."""
    orig_shape = x.shape
    n = x.size
    if n == 0:
        return x

    if n % _LANES == 0:
        # Fast path (all realistic NCHW activations): metadata-only reshape to
        # the widest lane-dense slab -> wide unmasked stores, no pad/slice.
        cols = _LANES
        for cand in (1024, 512, 256):
            if n % cand == 0:
                cols = cand
                break
        x2d = x.reshape(n // cols, cols)
    elif x.ndim >= 2:
        # Ragged lane count: keep the true trailing dim as a full-extent block
        # (legal for any size). Still zero wrapper copies; the masked stores on
        # the padded lanes are acceptable for this rare path.
        x2d = x.reshape(-1, orig_shape[-1])
    else:
        # 0-D / 1-D ragged length: single full-extent row.
        x2d = x.reshape(1, n)

    out2d = _clipped_relu_2d(x2d)
    return out2d.reshape(orig_shape)


if __name__ == "__main__":
    key = jax.random.PRNGKey(0)

    # NCHW input (as the PyTorch module would see), scaled so values span
    # below 0 and above 255 to exercise both clip bounds.
    x = jax.random.normal(key, (2, 4, 16, 16), dtype=jnp.float32) * 200.0
    y = clipped_relu(x)
    jax.block_until_ready(y)
    y_ref = jnp.clip(x, 0.0, 255.0)
    assert y.shape == x.shape and y.dtype == x.dtype
    assert jnp.allclose(y, y_ref), "mismatch vs reference clamp (aligned f32 path)"

    # bf16 (exercises the dtype-scaled tile / sublane alignment).
    xb = (jax.random.normal(jax.random.PRNGKey(2), (2, 4, 16, 16), dtype=jnp.float32)
          * 200.0).astype(jnp.bfloat16)
    yb = clipped_relu(xb)
    jax.block_until_ready(yb)
    assert yb.dtype == jnp.bfloat16
    assert jnp.allclose(yb.astype(jnp.float32),
                        jnp.clip(xb.astype(jnp.float32), 0.0, 255.0)), \
        "mismatch vs reference clamp (bf16 path)"

    # Ragged (non multiple-of-128) shape: zero-copy full-extent-block path.
    x2 = jax.random.normal(jax.random.PRNGKey(1), (3, 5, 7), dtype=jnp.float32) * 200.0
    y2 = clipped_relu(x2)
    jax.block_until_ready(y2)
    assert y2.shape == x2.shape and y2.dtype == x2.dtype
    assert jnp.allclose(y2, jnp.clip(x2, 0.0, 255.0)), "mismatch vs reference clamp (ragged path)"

    print("KERNEL_OK")
</pallas_src>

<mosaic_0001>
module attributes {stable_mosaic.version = 11 : i64} {
  func.func @_clipped_relu_kernel(%arg0: i32, %arg1: memref<2x1024xf32, #tpu.memory_space<vmem>>, %arg2: memref<2x1024xf32, #tpu.memory_space<vmem>>) attributes {dimension_semantics = [#tpu.dimension_semantics<parallel>], iteration_bounds = array<i64: 1>, scalar_prefetch = 0 : i64, scratch_operands = 0 : i64, tpu.core_type = #tpu.core_type<tc>, window_params = [{transform_indices = @transform_0, window_bounds = array<i64: 2, 1024>}, {transform_indices = @transform_1, window_bounds = array<i64: 2, 1024>}]} {
    %c0 = arith.constant 0 : index
    %c0_0 = arith.constant 0 : index
    %0 = vector.load %arg1[%c0, %c0_0] : memref<2x1024xf32, #tpu.memory_space<vmem>>, vector<2x1024xf32>
    %cst = arith.constant 0.000000e+00 : f32
    %1 = vector.broadcast %cst : f32 to vector<2x1024xf32>
    %2 = arith.maximumf %0, %1 : vector<2x1024xf32>
    %cst_1 = arith.constant 2.550000e+02 : f32
    %3 = vector.broadcast %cst_1 : f32 to vector<2x1024xf32>
    %4 = arith.minimumf %2, %3 : vector<2x1024xf32>
    %c0_2 = arith.constant 0 : index
    %c0_3 = arith.constant 0 : index
    %5 = vector.load %arg2[%c0_2, %c0_3] : memref<2x1024xf32, #tpu.memory_space<vmem>>, vector<2x1024xf32>
    tpu.vector_store %arg2[%c0_2, %c0_3], %4 {strides = array<i32>} : memref<2x1024xf32, #tpu.memory_space<vmem>>, vector<2x1024xf32>,
    return
  }
  func.func @transform_0(%arg0: i32) -> (i32, i32) {
    %c0_i32 = arith.constant 0 : i32
    %c0_i32_0 = arith.constant 0 : i32
    return %arg0, %c0_i32 : i32, i32
  }
  func.func @transform_1(%arg0: i32) -> (i32, i32) {
    %c0_i32 = arith.constant 0 : i32
    %c0_i32_0 = arith.constant 0 : i32
    return %arg0, %c0_i32 : i32, i32
  }
}

</mosaic_0001>

<llo_original>
// kernel: tpu_custom_call.1
$region0: #{tpu_custom_call.1}
  #allocation0 [shape = 'u32[]', space=smem, size = 0x4, offset = 0x4, fixed_abs, tag = 'smem constant byte address 0x4 - core index']
  #allocation1 [shape = 'u32[144,128]{1,0:T(1,128)}', space=vmem, size = 0x12000, scoped, tag = 'internal scratch']
  %s0 = inlined_call_operand.hbm [shape: f32[2,1024], index: 0, kind: input, shape index: {}]
  %s1 = inlined_call_operand.hbm [shape: f32[2,1024], index: 1, kind: output, shape index: {}]
  %s2 = sld [smem:[#allocation0]]
  $region18: #{tpu_custom_call.1} parent=0
    _
  %s4 = ssub.s32 1, %s2
  %s5 = scalar_select 0, %s4, %s2
  $region1: #{tpu_custom_call.1} parent=0
    #allocation2 [shape = 'u8[8192]{0}', space=vmem, size = 0x2000, scoped, tag = 'input window, operand 0, single buffered']
    #allocation3 [shape = 's32[1]{0}', space=sflag, size = 0x4, scoped, tag = 'scoped memory for tpu_custom_call.1']
    #allocation4 [shape = 's32[1]{0}', space=sflag, size = 0x4, scoped, tag = 'scoped memory for tpu_custom_call.1']
    #allocation5 [shape = 'u8[8192]{0}', space=vmem, size = 0x2000, scoped, tag = 'output window, operand 0, single buffered']
    %6 = vsyncpa [#allocation3], 0
    %7 = vsyncpa [#allocation4], 0
    // Predicated region
    $region2: #{tpu_custom_call.1} parent=1 // pred_check
      _
    $region3: #{tpu_custom_call.1} parent=1 // pred_check_branch
      %9 = sbr.rel (0) target = $region5
    $region4: #{tpu_custom_call.1} parent=1 // pred_region
      %s11 = ssub.s32 256, 256
      %12 = vsyncadd [#allocation3], %s11
      %s14 = sshll.u32 [#allocation2], 4
      %s15 = int_to_ptr.vmem [resolvable:$true] %s14
      %17 = dma.hbm_to_vmem [thread:$0]  %s0, 256, %s15, [#allocation3]
    $region5: #{tpu_custom_call.1} parent=1 // pred_fallthru
      _
    // Predicated region
    $region6: #{tpu_custom_call.1} parent=1 // pred_check
      _
    $region7: #{tpu_custom_call.1} parent=1 // pred_check_branch
      %19 = sbr.rel (0) target = $region9
    $region8: #{tpu_custom_call.1} parent=1 // pred_region
      %20 = dma.done [#allocation3], 256
    $region9: #{tpu_custom_call.1} parent=1 // pred_fallthru
      _
    %v21 = vld [vmem:[#allocation2] sm:$0xff]
    %v22 = vld [vmem:[#allocation2 + $0x8] sm:$0xff]
    %v23 = vmax.f32 %v21, 0.0
    %v24 = vmax.f32 %v22, 0.0
    %v25 = vmin.f32 %v23, 255.0
    %v26 = vmin.f32 %v24, 255.0
    %27 = vst [vmem:[#allocation5] sm:$0xff] %v25
    %28 = vst [vmem:[#allocation5 + $0x8] sm:$0xff] %v26
    // Predicated region
    $region10: #{tpu_custom_call.1} parent=1 // pred_check
      _
    $region11: #{tpu_custom_call.1} parent=1 // pred_check_branch
      %30 = sbr.rel (0) target = $region13
    $region12: #{tpu_custom_call.1} parent=1 // pred_region
      %s32 = ssub.s32 256, 256
      %33 = vsyncadd [#allocation4], %s32
      %s35 = sshll.u32 [#allocation5], 4
      %s36 = int_to_ptr.vmem [resolvable:$true] %s35
      %38 = dma.vmem_to_hbm [thread:$0]  %s36, 256, %s1, [#allocation4]
    $region13: #{tpu_custom_call.1} parent=1 // pred_fallthru
      _
    // Predicated region
    $region14: #{tpu_custom_call.1} parent=1 // pred_check
      _
    $region15: #{tpu_custom_call.1} parent=1 // pred_check_branch
      %40 = sbr.rel (0) target = $region17
    $region16: #{tpu_custom_call.1} parent=1 // pred_region
      %41 = dma.done [#allocation4], 256
    $region17: #{tpu_custom_call.1} parent=1 // pred_fallthru
      _
    %42 = vsyncpa [#allocation3], 1
    %43 = vsyncpa [#allocation4], 1

</llo_original>
